<compile_context>
chip_gen: v7x
topology: tpu7x:2x2x1
jax: 0.10.0
libtpu: 0.0.40
codegen_flags: <defaults>
</compile_context>

<pallas_src>
import functools
import math

import jax
import jax.numpy as jnp
from jax import lax
from jax.experimental import pallas as pl
from jax.experimental.pallas import tpu as pltpu

SCALE_WEIGHT = 0.5 ** 0.5
COMPUTE_DTYPE = jnp.bfloat16   # MXU-rate operand dtype; accumulation stays f32.

# Scoped-VMEM budget.  64 MiB is a good default for v5e/v6e (128 MiB physical);
# on v7x (64 MiB per TC) drop this to <= 48 MiB and/or shrink seq_tile_cap.
_VMEM_LIMIT = 64 * 1024 * 1024


def _round_up(x, m):
    return (x + m - 1) // m * m


def _pick_tile(dim, cap, align):
    """Largest `align`-multiple divisor of `dim` that is <= cap.

    Returns `dim` itself when dim <= cap (full-extent block), or 0 when no
    aligned divisor exists (caller decides how to fall back)."""
    if dim <= cap:
        return dim
    t = (cap // align) * align
    while t >= align:
        if dim % t == 0:
            return t
        t -= align
    return 0


# ----------------------------- linear kernel ------------------------------ #
def _linear_kernel(x_ref, w_ref, b_ref, o_ref, acc_ref):
    k = pl.program_id(2)

    @pl.when(k == 0)
    def _():
        acc_ref[...] = jnp.zeros_like(acc_ref)

    acc_ref[...] += jnp.dot(x_ref[...], w_ref[...],
                            preferred_element_type=jnp.float32)

    @pl.when(k == pl.num_programs(2) - 1)
    def _():
        o_ref[...] = (acc_ref[...]
                      + b_ref[...].astype(jnp.float32)).astype(o_ref.dtype)


def linear(x2d, w, b, *, tm_cap=512, tn_cap=512, tk_cap=1024):
    """x2d: (M, D) @ w: (D, H) + b: (H,) -> (M, H); f32 accumulation."""
    M, D = x2d.shape
    H = w.shape[1]

    tm = _pick_tile(M, tm_cap, 8)
    tk = _pick_tile(D, tk_cap, 128)
    tn = _pick_tile(H, tn_cap, 128)

    Mp, Dp, Hp = M, D, H
    # TODO(synk): the jnp.pad fallbacks below cost an extra HBM pass; a masked
    # ragged-tile kernel would remove them.  They only trigger when a dim has
    # no aligned divisor <= cap (rare for real configs).
    if tm == 0:
        tm, Mp = tm_cap, _round_up(M, tm_cap)
        x2d = jnp.pad(x2d, ((0, Mp - M), (0, 0)))
    if tk == 0:
        tk, Dp = tk_cap, _round_up(D, tk_cap)
        x2d = jnp.pad(x2d, ((0, 0), (0, Dp - D)))
        w = jnp.pad(w, ((0, Dp - D), (0, 0)))
    if tn == 0:
        tn, Hp = tn_cap, _round_up(H, tn_cap)
        w = jnp.pad(w, ((0, 0), (0, Hp - H)))
        b = jnp.pad(b, (0, Hp - H))

    out = pl.pallas_call(
        _linear_kernel,
        out_shape=jax.ShapeDtypeStruct((Mp, Hp), x2d.dtype),
        grid=(Mp // tm, Hp // tn, Dp // tk),
        in_specs=[
            pl.BlockSpec((tm, tk), lambda i, j, k: (i, k)),
            pl.BlockSpec((tk, tn), lambda i, j, k: (k, j)),
            pl.BlockSpec((1, tn), lambda i, j, k: (0, j)),
        ],
        out_specs=pl.BlockSpec((tm, tn), lambda i, j, k: (i, j)),
        scratch_shapes=[pltpu.VMEM((tm, tn), jnp.float32)],
        compiler_params=pltpu.CompilerParams(
            dimension_semantics=("parallel", "parallel", "arbitrary"),
            vmem_limit_bytes=_VMEM_LIMIT),
    )(x2d, w, b.astype(jnp.float32).reshape(1, Hp))

    if (Mp, Hp) != (M, H):
        out = out[:M, :H]
    return out


# ------------------------ gated conv layer kernels -------------------------- #
def _glu_tile_body(taps, cur, wo_ref, wg_ref, bo_ref, bg_ref, o_ref,
                   transpose_out):
    tT, H = cur.shape
    # Gate half first so the sigmoid (EUP slot) overlaps the 'out' dots (MXU).
    gate = jnp.broadcast_to(bg_ref[...].astype(jnp.float32), (tT, H))
    for k, xk in enumerate(taps):
        gate = gate + jnp.dot(xk, wg_ref[k], preferred_element_type=jnp.float32)
    sig = jax.nn.sigmoid(gate)

    out = jnp.broadcast_to(bo_ref[...].astype(jnp.float32), (tT, H))
    for k, xk in enumerate(taps):
        out = out + jnp.dot(xk, wo_ref[k], preferred_element_type=jnp.float32)

    # StackedCNN residual + scale fused: x = (x + glu(conv(x))) * SCALE_WEIGHT
    res = ((cur.astype(jnp.float32) + out * sig) * SCALE_WEIGHT).astype(o_ref.dtype)
    # TODO(synk): res.T shares the XLU with the rolls; if the bundle dump shows
    # XLU binding on the last layer, switch that layer's taps to the masked
    # single-tile path or drop the fused transpose for that layer only.
    o_ref[0] = res.T if transpose_out else res


def _gated_conv_kernel_tiled(prev_ref, cur_ref, next_ref, wo_ref, wg_ref,
                             bo_ref, bg_ref, o_ref, *, width, pad, halo,
                             n_t_blocks, transpose_out):
    j = pl.program_id(1)
    cur = cur_ref[0]                                    # (tT, H) compute dtype
    tT, _ = cur.shape

    # `halo`-row (8-aligned) neighbor blocks replace full prev/next tiles:
    # activation HBM traffic drops from 3x to ~1.0x per layer.
    prev_tail = prev_ref[0]
    next_head = next_ref[0]
    prev_tail = jnp.where(j > 0, prev_tail, jnp.zeros_like(prev_tail))
    next_head = jnp.where(j < n_t_blocks - 1, next_head,
                          jnp.zeros_like(next_head))

    # All pieces are 8-sublane multiples -> aligned concat (no relayout copies).
    xext = jnp.concatenate([prev_tail, cur, next_head], axis=0)
    n_ext = tT + 2 * halo

    taps = []
    for k in range(width):                              # 1-D conv taps along T
        s = pad - k
        if s == 0:
            taps.append(cur)
        else:
            # Shift via XLU roll (slot idle while the MXU streams the dots);
            # the [halo : halo+tT] slice is 8-aligned -> no relayout.
            rolled = pltpu.roll(xext, shift=s % n_ext, axis=0)
            taps.append(rolled[halo:halo + tT, :])

    _glu_tile_body(taps, cur, wo_ref, wg_ref, bo_ref, bg_ref, o_ref,
                   transpose_out)


def _gated_conv_kernel_single(cur_ref, wo_ref, wg_ref, bo_ref, bg_ref, o_ref,
                              *, width, pad, transpose_out):
    cur = cur_ref[0]                                    # (T, H)
    T, H = cur.shape
    row = lax.broadcasted_iota(jnp.int32, (T, H), 0)
    zero = jnp.zeros_like(cur)

    taps = []
    for k in range(width):
        s = pad - k
        if s == 0:
            taps.append(cur)
        else:
            rolled = pltpu.roll(cur, shift=s % T, axis=0)
            if s > 0:      # rows [0, s) come from the zero padding
                taps.append(jnp.where(row < s, zero, rolled))
            else:          # rows [T+s, T) come from the zero padding
                taps.append(jnp.where(row >= T + s, zero, rolled))

    _glu_tile_body(taps, cur, wo_ref, wg_ref, bo_ref, bg_ref, o_ref,
                   transpose_out)


def gated_conv_layer(x, w_out, w_gate, b_out, b_gate, *, transpose_out=False,
                     seq_tile_cap=512):
    # TODO(synk): dropout omitted (eval-mode identity); training-mode dropout
    # would use pltpu.prng_seed / pltpu.prng_random_bits inside the kernel.
    B, T, H = x.shape
    width = w_out.shape[0]
    pad = width // 2
    halo = max(8, _round_up(pad, 8))

    # Last dim of the transposed output block is tT -> needs 128 alignment.
    align = 128 if transpose_out else 8
    tT = _pick_tile(T, seq_tile_cap, align)
    if tT == 0 or tT % halo != 0:
        # TODO(synk): no aligned divisor of T -> single full-T tile (correct but
        # unpipelined along T); a masked partial-tile variant would fix this.
        tT = T
    nT = T // tT

    if transpose_out:
        out_shape = jax.ShapeDtypeStruct((B, H, T), x.dtype)
    else:
        out_shape = jax.ShapeDtypeStruct((B, T, H), x.dtype)

    # Weights/biases use constant index maps so Mosaic keeps them resident
    # across the grid.  TODO(synk): verify in the MLIR that they are
    # single-buffered; they dominate VMEM at large H on v7x if not.
    w_spec = lambda *_: (0, 0, 0)
    b_spec = lambda *_: (0, 0)

    if nT == 1:
        kernel = functools.partial(_gated_conv_kernel_single, width=width,
                                   pad=pad, transpose_out=transpose_out)
        grid = (B,)
        dims = ("parallel",)
        in_specs = [
            pl.BlockSpec((1, T, H), lambda bi: (bi, 0, 0)),
            pl.BlockSpec((width, H, H), w_spec),
            pl.BlockSpec((width, H, H), w_spec),
            pl.BlockSpec((1, H), b_spec),
            pl.BlockSpec((1, H), b_spec),
        ]
        if transpose_out:
            out_spec = pl.BlockSpec((1, H, T), lambda bi: (bi, 0, 0))
        else:
            out_spec = pl.BlockSpec((1, T, H), lambda bi: (bi, 0, 0))
        args = (x, w_out, w_gate, b_out, b_gate)
    else:
        hpt = tT // halo                 # halo-blocks per T-tile
        n_hb = T // halo                 # total halo-blocks along T
        kernel = functools.partial(_gated_conv_kernel_tiled, width=width,
                                   pad=pad, halo=halo, n_t_blocks=nT,
                                   transpose_out=transpose_out)
        grid = (B, nT)
        dims = ("parallel", "parallel")
        in_specs = [
            # `halo`-row neighbor blocks (indexed in halo-row units), clamped at
            # the grid boundary (contents are zero-masked in-kernel there).
            pl.BlockSpec((1, halo, H),
                         lambda bi, j: (bi, jnp.maximum(j * hpt - 1, 0), 0)),
            pl.BlockSpec((1, tT, H), lambda bi, j: (bi, j, 0)),
            pl.BlockSpec((1, halo, H),
                         lambda bi, j: (bi, jnp.minimum((j + 1) * hpt, n_hb - 1), 0)),
            pl.BlockSpec((width, H, H), w_spec),
            pl.BlockSpec((width, H, H), w_spec),
            pl.BlockSpec((1, H), b_spec),
            pl.BlockSpec((1, H), b_spec),
        ]
        if transpose_out:
            out_spec = pl.BlockSpec((1, H, tT), lambda bi, j: (bi, 0, j))
        else:
            out_spec = pl.BlockSpec((1, tT, H), lambda bi, j: (bi, j, 0))
        args = (x, x, x, w_out, w_gate, b_out, b_gate)

    return pl.pallas_call(
        kernel,
        out_shape=out_shape,
        grid=grid,
        in_specs=in_specs,
        out_specs=out_spec,
        compiler_params=pltpu.CompilerParams(
            dimension_semantics=dims, vmem_limit_bytes=_VMEM_LIMIT),
    )(*args)


# ------------------------------ GLU forward -------------------------------- #
def glu_forward(emb, params, *, seq_tile_cap=512):
    """emb: (B, T, input_size) -> (B, hidden_size, T)   (matches PyTorch GLU)."""
    B, T, D = emb.shape
    cdt = params["lin_w"].dtype
    h = linear(emb.reshape(B * T, D).astype(cdt), params["lin_w"], params["lin_b"])
    H = h.shape[-1]
    x = h.reshape(B, T, H)      # == _shape_transform(emb_remap), (B,T,H) layout
    conv = params["conv"]
    if not conv:
        return jnp.transpose(x, (0, 2, 1))
    for li, (wo, wg, bo, bg) in enumerate(conv):
        # last layer writes (B, H, T) directly -> no separate transpose pass
        x = gated_conv_layer(x, wo, wg, bo, bg,
                             transpose_out=(li == len(conv) - 1),
                             seq_tile_cap=seq_tile_cap)
    return x


# --------------------------- parameter creation ----------------------------- #
def init_params(key, num_layers, input_size, hidden_size, width, dropout):
    """Raw f32 params matching the PyTorch module's init."""
    keys = jax.random.split(key, 2 + 2 * num_layers)
    lim = math.sqrt(6.0 / (input_size + hidden_size))
    lin_w = jax.random.uniform(keys[0], (input_size, hidden_size),
                               jnp.float32, -lim, lim)
    lin_b = jax.random.uniform(keys[1], (hidden_size,), jnp.float32, -0.01, 0.01)
    conv = []
    gain = (4.0 * (1.0 - dropout)) ** 0.5
    fan_in = hidden_size * width
    fan_out = 2 * hidden_size * width
    climit = gain * math.sqrt(6.0 / (fan_in + fan_out))
    for i in range(num_layers):
        cw = jax.random.uniform(keys[2 + 2 * i],
                                (width, hidden_size, 2 * hidden_size),
                                jnp.float32, -climit, climit)
        cb = jax.random.uniform(keys[3 + 2 * i], (2 * hidden_size,),
                                jnp.float32, -0.01, 0.01)
        conv.append((cw, cb))
    return {"lin_w": lin_w, "lin_b": lin_b, "conv": conv}


def prepare_params(raw, compute_dtype=COMPUTE_DTYPE):
    """One-time preprocessing (hoisted out of the forward): split the fused
    (width, H, 2H) conv weight into out/gate halves, reshape biases, cast
    matmul operands to `compute_dtype` (accumulation stays f32 in-kernel)."""
    H = raw["lin_w"].shape[1]
    conv = []
    for cw, cb in raw["conv"]:
        conv.append((cw[:, :, :H].astype(compute_dtype),
                     cw[:, :, H:].astype(compute_dtype),
                     cb[:H].reshape(1, H).astype(jnp.float32),
                     cb[H:].reshape(1, H).astype(jnp.float32)))
    return {"lin_w": raw["lin_w"].astype(compute_dtype),
            "lin_b": raw["lin_b"].astype(jnp.float32),
            "conv": conv}


# ------------------------------ reference ----------------------------------- #
def glu_reference(emb, params):
    """Pure-JAX reference with the same dtype policy as the kernels
    (compute-dtype operands, f32 accumulation, compute-dtype intermediates)."""
    cdt = params["lin_w"].dtype
    B, T, D = emb.shape
    x2d = emb.reshape(B * T, D).astype(cdt)
    h = jnp.dot(x2d, params["lin_w"], preferred_element_type=jnp.float32)
    h = (h + params["lin_b"]).astype(cdt)
    H = h.shape[-1]
    x = h.reshape(B, T, H)
    for wo, wg, bo, bg in params["conv"]:
        width = wo.shape[0]
        pad = width // 2
        xp = jnp.pad(x, ((0, 0), (pad, pad), (0, 0)))
        out = jnp.zeros((B, T, H), jnp.float32) + bo.astype(jnp.float32)
        gate = jnp.zeros((B, T, H), jnp.float32) + bg.astype(jnp.float32)
        for k in range(width):
            xk = xp[:, k:k + T, :]
            out = out + jnp.einsum("btc,cd->btd", xk, wo[k],
                                   preferred_element_type=jnp.float32)
            gate = gate + jnp.einsum("btc,cd->btd", xk, wg[k],
                                     preferred_element_type=jnp.float32)
        glu = out * jax.nn.sigmoid(gate)
        x = ((x.astype(jnp.float32) + glu) * SCALE_WEIGHT).astype(cdt)
    return jnp.transpose(x, (0, 2, 1))


if __name__ == "__main__":
    key = jax.random.PRNGKey(0)
    k_p1, k_x1, k_p2, k_x2 = jax.random.split(key, 4)

    # Config 1: small shapes -> single-tile (no-halo) conv path.
    B, T, input_size, hidden_size = 2, 8, 16, 32
    num_layers, width, dropout = 2, 3, 0.2
    params = prepare_params(
        init_params(k_p1, num_layers, input_size, hidden_size, width, dropout))
    emb = jax.random.normal(k_x1, (B, T, input_size), jnp.float32)
    out = jax.block_until_ready(glu_forward(emb, params))
    ref = glu_reference(emb, params)
    assert out.shape == (B, hidden_size, T), out.shape
    err = float(jnp.max(jnp.abs(out.astype(jnp.float32) - ref.astype(jnp.float32))))
    assert jnp.allclose(out.astype(jnp.float32), ref.astype(jnp.float32),
                        atol=5e-2, rtol=5e-2), err

    # Config 2: longer sequence -> tiled conv path with 8-row halo blocks and
    # the fused-transpose tiled output of the last layer.
    B2, T2, D2, H2 = 2, 256, 16, 64
    params2 = prepare_params(init_params(k_p2, 2, D2, H2, 3, 0.2))
    emb2 = jax.random.normal(k_x2, (B2, T2, D2), jnp.float32)
    out2 = jax.block_until_ready(glu_forward(emb2, params2, seq_tile_cap=128))
    ref2 = glu_reference(emb2, params2)
    assert out2.shape == (B2, H2, T2), out2.shape
    err2 = float(jnp.max(jnp.abs(out2.astype(jnp.float32) - ref2.astype(jnp.float32))))
    assert jnp.allclose(out2.astype(jnp.float32), ref2.astype(jnp.float32),
                        atol=5e-2, rtol=5e-2), err2

    print("KERNEL_OK")
</pallas_src>

<mosaic_0001>
module attributes {stable_mosaic.version = 11 : i64} {
  func.func @_linear_kernel(%arg0: i32, %arg1: i32, %arg2: i32, %arg3: memref<16x16xbf16, #tpu.memory_space<vmem>>, %arg4: memref<16x32xbf16, #tpu.memory_space<vmem>>, %arg5: memref<1x32xf32, #tpu.memory_space<vmem>>, %arg6: memref<16x32xbf16, #tpu.memory_space<vmem>>, %arg7: memref<16x32xf32, #tpu.memory_space<vmem>>) attributes {dimension_semantics = [#tpu.dimension_semantics<parallel>, #tpu.dimension_semantics<parallel>, #tpu.dimension_semantics<arbitrary>], iteration_bounds = array<i64: 1, 1, 1>, scalar_prefetch = 0 : i64, scratch_operands = 1 : i64, tpu.core_type = #tpu.core_type<tc>, window_params = [{transform_indices = @transform_0, window_bounds = array<i64: 16, 16>}, {transform_indices = @transform_1, window_bounds = array<i64: 16, 32>}, {transform_indices = @transform_2, window_bounds = array<i64: 1, 32>}, {transform_indices = @transform_3, window_bounds = array<i64: 16, 32>}]} {
    %c0_i32 = arith.constant 0 : i32
    %0 = arith.cmpi eq, %arg2, %c0_i32 : i32
    %1 = arith.extui %0 : i1 to i32
    %c0_i32_0 = arith.constant 0 : i32
    %2 = arith.cmpi ne, %1, %c0_i32_0 : i32
    scf.if %2 {
      %cst_10 = arith.constant 0.000000e+00 : f32
      %12 = vector.broadcast %cst_10 : f32 to vector<16x32xf32>
      %c0_11 = arith.constant 0 : index
      %c0_12 = arith.constant 0 : index
      %13 = vector.load %arg7[%c0_11, %c0_12] : memref<16x32xf32, #tpu.memory_space<vmem>>, vector<16x32xf32>
      tpu.vector_store %arg7[%c0_11, %c0_12], %12 {strides = array<i32>} : memref<16x32xf32, #tpu.memory_space<vmem>>, vector<16x32xf32>,
    } else {
    }
    %c0 = arith.constant 0 : index
    %c0_1 = arith.constant 0 : index
    %3 = vector.load %arg7[%c0, %c0_1] : memref<16x32xf32, #tpu.memory_space<vmem>>, vector<16x32xf32>
    %c0_2 = arith.constant 0 : index
    %c0_3 = arith.constant 0 : index
    %4 = vector.load %arg3[%c0_2, %c0_3] : memref<16x16xbf16, #tpu.memory_space<vmem>>, vector<16x16xbf16>
    %c0_4 = arith.constant 0 : index
    %c0_5 = arith.constant 0 : index
    %5 = vector.load %arg4[%c0_4, %c0_5] : memref<16x32xbf16, #tpu.memory_space<vmem>>, vector<16x32xbf16>
    %cst = arith.constant dense<0.000000e+00> : vector<16x32xf32>
    %6 = tpu.matmul %4, %5, %cst {dimension_numbers = #tpu.dot_dimension_numbers<[1], [0], [0], [1], [0, 0, 1, 1], [], []>} : vector<16x16xbf16>, vector<16x32xbf16>, vector<16x32xf32> -> vector<16x32xf32>
    %7 = arith.addf %3, %6 : vector<16x32xf32>
    %c0_6 = arith.constant 0 : index
    %c0_7 = arith.constant 0 : index
    %8 = vector.load %arg7[%c0_6, %c0_7] : memref<16x32xf32, #tpu.memory_space<vmem>>, vector<16x32xf32>
    tpu.vector_store %arg7[%c0_6, %c0_7], %7 {strides = array<i32>} : memref<16x32xf32, #tpu.memory_space<vmem>>, vector<16x32xf32>,
    %c0_i32_8 = arith.constant 0 : i32
    %9 = arith.cmpi eq, %arg2, %c0_i32_8 : i32
    %10 = arith.extui %9 : i1 to i32
    %c0_i32_9 = arith.constant 0 : i32
    %11 = arith.cmpi ne, %10, %c0_i32_9 : i32
    scf.if %11 {
      %c0_10 = arith.constant 0 : index
      %c0_11 = arith.constant 0 : index
      %12 = vector.load %arg7[%c0_10, %c0_11] : memref<16x32xf32, #tpu.memory_space<vmem>>, vector<16x32xf32>
      %c0_12 = arith.constant 0 : index
      %c0_13 = arith.constant 0 : index
      %13 = vector.load %arg5[%c0_12, %c0_13] : memref<1x32xf32, #tpu.memory_space<vmem>>, vector<1x32xf32>
      %14 = vector.broadcast %13 : vector<1x32xf32> to vector<16x32xf32>
      %15 = arith.addf %12, %14 : vector<16x32xf32>
      %16 = arith.truncf %15 : vector<16x32xf32> to vector<16x32xbf16>
      %c0_14 = arith.constant 0 : index
      %c0_15 = arith.constant 0 : index
      %17 = vector.load %arg6[%c0_14, %c0_15] : memref<16x32xbf16, #tpu.memory_space<vmem>>, vector<16x32xbf16>
      tpu.vector_store %arg6[%c0_14, %c0_15], %16 {strides = array<i32>} : memref<16x32xbf16, #tpu.memory_space<vmem>>, vector<16x32xbf16>,
    } else {
    }
    return
  }
  func.func @transform_0(%arg0: i32, %arg1: i32, %arg2: i32) -> (i32, i32) {
    %c0_i32 = arith.constant 0 : i32
    return %arg0, %arg2 : i32, i32
  }
  func.func @transform_1(%arg0: i32, %arg1: i32, %arg2: i32) -> (i32, i32) {
    %c0_i32 = arith.constant 0 : i32
    return %arg2, %arg1 : i32, i32
  }
  func.func @transform_2(%arg0: i32, %arg1: i32, %arg2: i32) -> (i32, i32) {
    %c0_i32 = arith.constant 0 : i32
    %c0_i32_0 = arith.constant 0 : i32
    return %c0_i32, %arg1 : i32, i32
  }
  func.func @transform_3(%arg0: i32, %arg1: i32, %arg2: i32) -> (i32, i32) {
    %c0_i32 = arith.constant 0 : i32
    return %arg0, %arg1 : i32, i32
  }
}

</mosaic_0001>

<llo_original>
// kernel: tpu_custom_call.1
$region0: #{tpu_custom_call.1}
  #allocation0 [shape = 'u32[]', space=smem, size = 0x4, offset = 0x4, fixed_abs, tag = 'smem constant byte address 0x4 - core index']
  #allocation1 [shape = 'u32[144,128]{1,0:T(1,128)}', space=vmem, size = 0x12000, scoped, tag = 'internal scratch']
  #allocation2 [shape = 'f32[16,32]{1,0:T(8,128)}', space=vmem, size = 0x2000, scoped, tag = 'scratch operand']
  %s0 = inlined_call_operand.hbm [shape: bf16[16,16], index: 0, kind: input, shape index: {}]
  %s1 = inlined_call_operand.hbm [shape: bf16[16,32], index: 1, kind: input, shape index: {}]
  %s2 = inlined_call_operand.hbm [shape: f32[1,32], index: 2, kind: input, shape index: {}]
  %s3 = inlined_call_operand.hbm [shape: bf16[16,32], index: 3, kind: output, shape index: {}]
  %s4 = sld [smem:[#allocation0]]
  $region42: #{tpu_custom_call.1} parent=0
    _
  %s6 = ssub.s32 1, %s4
  %s7 = scalar_select 0, %s6, %s4
  $region1: #{tpu_custom_call.1} parent=0
    #allocation3 [shape = 'u8[4096]{0}', space=vmem, size = 0x1000, scoped, tag = 'input window, operand 0, single buffered']
    #allocation4 [shape = 's32[1]{0}', space=sflag, size = 0x4, scoped, tag = 'scoped memory for tpu_custom_call.1']
    #allocation5 [shape = 's32[1]{0}', space=sflag, size = 0x4, scoped, tag = 'scoped memory for tpu_custom_call.1']
    #allocation6 [shape = 'u8[4096]{0}', space=vmem, size = 0x1000, scoped, tag = 'input window, operand 1, single buffered']
    #allocation7 [shape = 's32[1]{0}', space=sflag, size = 0x4, scoped, tag = 'scoped memory for tpu_custom_call.1']
    #allocation8 [shape = 'u8[512]{0}', space=vmem, size = 0x400, scoped, tag = 'input window, operand 2, single buffered']
    #allocation9 [shape = 'u8[4096]{0}', space=vmem, size = 0x1000, scoped, tag = 'output window, operand 0, single buffered']
    %8 = vsyncpa [#allocation4], 0
    %9 = vsyncpa [#allocation7], 0
    %10 = vsyncpa [#allocation5], 0
    // Predicated region
    $region2: #{tpu_custom_call.1} parent=1 // pred_check
      _
    $region3: #{tpu_custom_call.1} parent=1 // pred_check_branch
      %12 = sbr.rel (0) target = $region5
    $region4: #{tpu_custom_call.1} parent=1 // pred_region
      %s14 = ssub.s32 128, 128
      %15 = vsyncadd [#allocation4], %s14
      %s16 = sshll.u32 [#allocation3], 4
      %s17 = int_to_ptr.vmem [resolvable:$true] %s16
      %22 = dma.hbm_to_vmem [thread:$0]  %s0, 128, %s17, [#allocation4], 64, 64, 4
    $region5: #{tpu_custom_call.1} parent=1 // pred_fallthru
      _
    // Predicated region
    $region6: #{tpu_custom_call.1} parent=1 // pred_check
      _
    $region7: #{tpu_custom_call.1} parent=1 // pred_check_branch
      %24 = sbr.rel (0) target = $region9
    $region8: #{tpu_custom_call.1} parent=1 // pred_region
      %s26 = ssub.s32 128, 128
      %27 = vsyncadd [#allocation7], %s26
      %s28 = sshll.u32 [#allocation6], 4
      %s29 = int_to_ptr.vmem [resolvable:$true] %s28
      %34 = dma.hbm_to_vmem [thread:$0]  %s1, 128, %s29, [#allocation7], 64, 64, 4
    $region9: #{tpu_custom_call.1} parent=1 // pred_fallthru
      _
    // Predicated region
    $region10: #{tpu_custom_call.1} parent=1 // pred_check
      _
    $region11: #{tpu_custom_call.1} parent=1 // pred_check_branch
      %36 = sbr.rel (0) target = $region13
    $region12: #{tpu_custom_call.1} parent=1 // pred_region
      %s38 = ssub.s32 16, 16
      %39 = vsyncadd [#allocation7], %s38
      %s41 = sshll.u32 [#allocation8], 4
      %s42 = int_to_ptr.vmem [resolvable:$true] %s41
      %44 = dma.hbm_to_vmem [thread:$0]  %s2, 16, %s42, [#allocation7]
    $region13: #{tpu_custom_call.1} parent=1 // pred_fallthru
      _
    // Predicated region
    $region14: #{tpu_custom_call.1} parent=1 // pred_check
      _
    $region15: #{tpu_custom_call.1} parent=1 // pred_check_branch
      %46 = sbr.rel (0) target = $region17
    $region16: #{tpu_custom_call.1} parent=1 // pred_region
      %47 = dma.done [#allocation4], 128
    $region17: #{tpu_custom_call.1} parent=1 // pred_fallthru
      _
    // Predicated region
    $region18: #{tpu_custom_call.1} parent=1 // pred_check
      _
    $region19: #{tpu_custom_call.1} parent=1 // pred_check_branch
      %49 = sbr.rel (0) target = $region21
    $region20: #{tpu_custom_call.1} parent=1 // pred_region
      %50 = dma.done [#allocation7], 128
    $region21: #{tpu_custom_call.1} parent=1 // pred_fallthru
      _
    // Predicated region
    $region22: #{tpu_custom_call.1} parent=1 // pred_check
      _
    $region23: #{tpu_custom_call.1} parent=1 // pred_check_branch
      %52 = sbr.rel (0) target = $region25
    $region24: #{tpu_custom_call.1} parent=1 // pred_region
      %53 = dma.done [#allocation7], 16
    $region25: #{tpu_custom_call.1} parent=1 // pred_fallthru
      _
    %p55 = scmp.eq.s32.totalorder 0, 0
    // Predicated region
    $region26: #{tpu_custom_call.1} parent=1 // pred_check
      %p56 = pneg %p55
    $region27: #{tpu_custom_call.1} parent=1 // pred_check_branch
      %58 = sbr.rel (%p56) target = $region29
    $region28: #{tpu_custom_call.1} parent=1 // pred_region
      %vm59 = vcmask 261120
      %60 = vst.msk [vmem:[#allocation2] sm:$0xff] %vm59, 0.0
      %61 = vst.msk [vmem:[#allocation2 + $0x8] sm:$0xff] %vm59, 0.0
    $region29: #{tpu_custom_call.1} parent=1 // pred_fallthru
      _
    %v62 = vld [vmem:[#allocation2] sm:$0xff]
    %v63 = vld [vmem:[#allocation2 + $0x8] sm:$0xff]
    %v64 = vld [vmem:[#allocation3] sm:$0xf]
    %v65 = vld [vmem:[#allocation3 + $0x4] sm:$0xf]
    %v66 = vld [vmem:[#allocation6] sm:$0xf]
    %v67 = vld [vmem:[#allocation6 + $0x4] sm:$0xf]
    %v70 = vunpack.c.l.b16 %v64
    %v71 = vunpack.c.l.b16 %v65
    %v72 = vpack.c.b16 %v71, %v70
    %v75 = vunpack.c.l.b16 %v66
    %v76 = vunpack.c.l.b16 %v67
    %v77 = vpack.c.b16 %v76, %v75
    %vm79 = vcmask 130048
    %v81 = vsel %vm79, %v72, 0
    %83 = vmatprep.subr.bf16.mxu0 0
    %84 = vmatpush1.bf16.msra.mxu0 %v77
    %85 = vmatprep.subr.bf16.mxu0 0
    %86 = vmatpush1.bf16.msra.mxu0 0
    %87 = vmatprep.subr.bf16.mxu0 0
    %88 = vmatpush1.bf16.msra.mxu0 0
    %89 = vmatprep.subr.bf16.mxu0 0
    %90 = vmatpush1.bf16.msra.mxu0 0
    %91 = vmatprep.subr.bf16.mxu0 0
    %92 = vmatpush1.bf16.msra.mxu0 0
    %93 = vmatprep.subr.bf16.mxu0 0
    %94 = vmatpush1.bf16.msra.mxu0 0
    %95 = vmatprep.subr.bf16.mxu0 0
    %96 = vmatpush1.bf16.msra.mxu0 0
    %97 = vmatprep.subr.bf16.mxu0 0
    %98 = vmatpush1.bf16.msra.mxu0 0
    %99 = vmatprep.subr.bf16.mxu0 0
    %100 = vmatpush1.bf16.msra.mxu0 0
    %101 = vmatprep.subr.bf16.mxu0 0
    %102 = vmatpush1.bf16.msra.mxu0 0
    %103 = vmatprep.subr.bf16.mxu0 0
    %104 = vmatpush1.bf16.msra.mxu0 0
    %105 = vmatprep.subr.bf16.mxu0 0
    %106 = vmatpush1.bf16.msra.mxu0 0
    %107 = vmatprep.subr.bf16.mxu0 0
    %108 = vmatpush1.bf16.msra.mxu0 0
    %109 = vmatprep.subr.bf16.mxu0 0
    %110 = vmatpush1.bf16.msra.mxu0 0
    %111 = vmatprep.subr.bf16.mxu0 0
    %112 = vmatpush1.bf16.msra.mxu0 0
    %113 = vmatprep.subr.bf16.mxu0 0
    %114 = vmatpush1.bf16.msra.mxu0 0
    %115 = vmatprep.mubr.bf16.mxu0 0
    %116 = vmatmul.mubr.bf16.gmra.mrb[0].mxu0 %v81
    %v117 = vpop.f32.mrb[0].mxu0
    %v118 = vadd.f32 0.0, %v117
    %v119 = vpop.f32.mrb[0].mxu0
    %v120 = vpop.f32.mrb[0].mxu0
    %v121 = vadd.f32 0.0, %v120
    %v122 = vpop.f32.mrb[0].mxu0
    %123 = vdwg.mxu0
    %v124 = vadd.f32 %v62, %v118
    %v125 = vadd.f32 %v63, %v121
    %vm126 = vcmask 261120
    %127 = vst.msk [vmem:[#allocation2] sm:$0xff] %vm126, %v124
    %128 = vst.msk [vmem:[#allocation2 + $0x8] sm:$0xff] %vm126, %v125
    // Predicated region
    $region30: #{tpu_custom_call.1} parent=1 // pred_check
      %p129 = pneg %p55
    $region31: #{tpu_custom_call.1} parent=1 // pred_check_branch
      %131 = sbr.rel (%p129) target = $region33
    $region32: #{tpu_custom_call.1} parent=1 // pred_region
      %v132 = vld [vmem:[#allocation2] sm:$0xff]
      %v133 = vld [vmem:[#allocation2 + $0x8] sm:$0xff]
      %v134 = vld [vmem:[#allocation8] sm:$0x1]
      %v136 = vlaneseq
      %v137 = vshrl.u32 %v136, 7
      %v138 = vsub.s32 0, %v137
      %v139 = vrot.slane %v134, %v138
      %v141 = vadd.f32 %v132, %v139
      %v142 = vadd.f32 %v133, %v139
      %v143 = vpack.c.bf16 %v142, %v141
      %v145 = vunpack.c.l.b16 %v143
      %v146 = vunpack.c.h.b16 %v143
      %v147 = vpack.c.b16 %v145, %v145
      %v148 = vpack.c.b16 %v146, %v146
      %vm151 = vcmask 257024
      %152 = vst.msk [vmem:[#allocation9] sm:$0xf] %vm151, %v147
      %153 = vst.msk [vmem:[#allocation9 + $0x4] sm:$0xf] %vm151, %v148
    $region33: #{tpu_custom_call.1} parent=1 // pred_fallthru
      _
    // Predicated region
    $region34: #{tpu_custom_call.1} parent=1 // pred_check
      _
    $region35: #{tpu_custom_call.1} parent=1 // pred_check_branch
      %155 = sbr.rel (0) target = $region37
    $region36: #{tpu_custom_call.1} parent=1 // pred_region
      %s157 = ssub.s32 128, 128
      %158 = vsyncadd [#allocation5], %s157
      %s159 = sshll.u32 [#allocation9], 4
      %s160 = int_to_ptr.vmem [resolvable:$true] %s159
      %165 = dma.vmem_to_hbm [thread:$0]  %s160, 128, %s3, [#allocation5], 64, 64, 4
    $region37: #{tpu_custom_call.1} parent=1 // pred_fallthru
      _
    // Predicated region
    $region38: #{tpu_custom_call.1} parent=1 // pred_check
      _
    $region39: #{tpu_custom_call.1} parent=1 // pred_check_branch
      %167 = sbr.rel (0) target = $region41
    $region40: #{tpu_custom_call.1} parent=1 // pred_region
      %168 = dma.done [#allocation5], 128
    $region41: #{tpu_custom_call.1} parent=1 // pred_fallthru
      _
    %169 = vsyncpa [#allocation4], 1
    %170 = vsyncpa [#allocation7], 1
    %171 = vsyncpa [#allocation5], 1

</llo_original>
